<compile_context>
chip_gen: v7x
topology: tpu7x:2x2x1
jax: 0.10.0
libtpu: 0.0.40
codegen_flags: <defaults>
</compile_context>

<pallas_src>
import jax
import jax.numpy as jnp
from jax.experimental import pallas as pl
from jax.experimental.pallas import tpu as pltpu


def _mlp_kernel(x_ref, vm_ref, w2_ref, b2_ref, oT_ref):
    # x_ref : (tb, dim_in)          batch-major, straight from HBM
    # vm_ref: (dim_hidden, dim_in)  native torch (out, in) layout
    # w2_ref: (dim_out, dim_hidden) Lm already folded in
    # b2_ref: (dim_out, 1)          broadcasts over the batch lanes
    # oT_ref: (dim_out, tb)         feature-major output (lane-dense stores)
    #
    # Contract dim_in of both operands: (H, I) x (tb, I) -> (H, tb); batch lands
    # on the lane axis, so tanh / bias / stores are all lane-dense.
    h = jax.lax.dot_general(
        vm_ref[...], x_ref[...],
        dimension_numbers=(((1,), (1,)), ((), ())),
        preferred_element_type=jnp.float32,
    )
    h = jnp.tanh(h)
    y = jnp.dot(w2_ref[...], h, preferred_element_type=jnp.float32) + b2_ref[...]
    oT_ref[...] = y.astype(oT_ref.dtype)


def prepare_params(vm_w, wm_w, wm_b, lm_w):
    """One-time parameter preparation (kept OUT of the per-call forward path).

    Folds the fixed Lm linear into Wm:
        Lm(Wm h + b) = (Lm @ Wm) h + (Lm @ b)
    All weights stay in torch's (out, in) layout, which is exactly what the
    feature-major kernel consumes -> no transposes at forward time.
    """
    w2 = lm_w @ wm_w                    # (dim_out, dim_hidden)
    b2 = (lm_w @ wm_b).reshape(-1, 1)   # (dim_out, 1)
    return vm_w, w2, b2


def _pick_batch_tile(B, batch_tile):
    """Per-grid-step batch tile.

    * Tiny batches (< 256): one grid step, tb == B (full-dim blocks are always
      layout-legal).
    * Larger batches: tb must be a multiple of 128 (it is the lane axis of the
      output block).  Target >= 4 grid steps so the "parallel" batch axis can
      be sharded across v7x's two TensorCores and the ~0.35 us/step overhead is
      amortized; cap at `batch_tile`.
    """
    if B < 256:
        return B
    tb = ((B + 3) // 4 + 127) // 128 * 128   # round_up(cdiv(B, 4), 128)
    return max(128, min(batch_tile, tb))


def model_forward(x, params, *, batch_tile=16384):
    """x: (B, dim_in) f32.  params: output of prepare_params.  Returns (B, dim_out)."""
    vm_w, w2, b2 = params
    B, dim_in = x.shape
    dim_out = w2.shape[0]

    tb = _pick_batch_tile(B, batch_tile)
    grid = (pl.cdiv(B, tb),)

    full = lambda a: pl.BlockSpec(a.shape, lambda i: (0,) * a.ndim)

    oT = pl.pallas_call(
        _mlp_kernel,
        out_shape=jax.ShapeDtypeStruct((dim_out, B), x.dtype),
        grid=grid,
        in_specs=[
            pl.BlockSpec((tb, dim_in), lambda i: (i, 0)),   # batch-major input tile
            full(vm_w),                                     # grid-invariant weights
            full(w2),
            full(b2),
        ],
        out_specs=pl.BlockSpec((dim_out, tb), lambda i: (0, i)),
        compiler_params=pltpu.CompilerParams(
            dimension_semantics=("parallel",),              # megacore-shardable
        ),
    )(x, vm_w, w2, b2)

    # Review option (a): kernel stays lane-dense; only this tiny dim_out-wide
    # transpose back to torch's (B, dim_out) remains outside the kernel
    # (16 B/sample each way vs. the 64 B/sample input read).
    return oT.T


if __name__ == "__main__":
    # Small shapes consistent with the module (dim_hidden=6 is the module default).
    dim_in, dim_hidden, dim_out = 16, 6, 4

    key = jax.random.PRNGKey(0)
    k_x, k_vm, k_wm, k_wb, k_lm, k_x2 = jax.random.split(key, 6)

    vm_w = jax.random.normal(k_vm, (dim_hidden, dim_in), dtype=jnp.float32) * 0.1
    wm_w = jax.random.normal(k_wm, (dim_out, dim_hidden), dtype=jnp.float32) * 0.1
    wm_b = jax.random.normal(k_wb, (dim_out,), dtype=jnp.float32) * 0.1
    # Lm is fixed / non-trainable.  The module's default init (np.diag(np.ones()))
    # is a bug in the source; use a fixed NON-identity matrix here so the offline
    # Lm-folding algebra is actually exercised (review correctness concern).
    lm_w = (jnp.eye(dim_out, dtype=jnp.float32)
            + 0.05 * jax.random.normal(k_lm, (dim_out, dim_out), dtype=jnp.float32))

    params = prepare_params(vm_w, wm_w, wm_b, lm_w)   # one-time, outside fwd path

    def reference(xx):
        # Exact torch forward semantics: Lm(Wm(tanh(Vm(x))))
        y = jnp.tanh(xx @ vm_w.T) @ wm_w.T + wm_b
        return y @ lm_w.T

    # Small batch (single grid step).
    batch = 8
    x = jax.random.normal(k_x, (batch, dim_in), dtype=jnp.float32)
    out = jax.block_until_ready(model_forward(x, params))
    assert out.shape == (batch, dim_out)
    assert jnp.allclose(out, reference(x), atol=1e-5, rtol=1e-5)

    # Larger, non-multiple-of-128 batch -- exercises the tiled grid path
    # (tb = 128, 3 grid steps, partial edge tile clipped on store).
    batch2 = 300
    x2 = jax.random.normal(k_x2, (batch2, dim_in), dtype=jnp.float32)
    out2 = jax.block_until_ready(model_forward(x2, params))
    assert out2.shape == (batch2, dim_out)
    assert jnp.allclose(out2, reference(x2), atol=1e-5, rtol=1e-5)

    print("KERNEL_OK")
</pallas_src>

<mosaic_0001>
module attributes {stable_mosaic.version = 11 : i64} {
  func.func @_mlp_kernel(%arg0: i32, %arg1: memref<8x16xf32, #tpu.memory_space<vmem>>, %arg2: memref<6x16xf32, #tpu.memory_space<vmem>>, %arg3: memref<4x6xf32, #tpu.memory_space<vmem>>, %arg4: memref<4x1xf32, #tpu.memory_space<vmem>>, %arg5: memref<4x8xf32, #tpu.memory_space<vmem>>) attributes {dimension_semantics = [#tpu.dimension_semantics<parallel>], iteration_bounds = array<i64: 1>, scalar_prefetch = 0 : i64, scratch_operands = 0 : i64, tpu.core_type = #tpu.core_type<tc>, window_params = [{transform_indices = @transform_0, window_bounds = array<i64: 8, 16>}, {pipeline_mode = #tpu.pipeline_mode<synchronous>, transform_indices = @transform_1, window_bounds = array<i64: 6, 16>}, {pipeline_mode = #tpu.pipeline_mode<synchronous>, transform_indices = @transform_2, window_bounds = array<i64: 4, 6>}, {pipeline_mode = #tpu.pipeline_mode<synchronous>, transform_indices = @transform_3, window_bounds = array<i64: 4, 1>}, {transform_indices = @transform_4, window_bounds = array<i64: 4, 8>}]} {
    %c0 = arith.constant 0 : index
    %c0_0 = arith.constant 0 : index
    %0 = vector.load %arg2[%c0, %c0_0] : memref<6x16xf32, #tpu.memory_space<vmem>>, vector<6x16xf32>
    %c0_1 = arith.constant 0 : index
    %c0_2 = arith.constant 0 : index
    %1 = vector.load %arg1[%c0_1, %c0_2] : memref<8x16xf32, #tpu.memory_space<vmem>>, vector<8x16xf32>
    %cst = arith.constant dense<0.000000e+00> : vector<6x8xf32>
    %2 = tpu.matmul %0, %1, %cst {dimension_numbers = #tpu.dot_dimension_numbers<[1], [1], [0], [0], [0, 0, 1, 0], [], []>} : vector<6x16xf32>, vector<8x16xf32>, vector<6x8xf32> -> vector<6x8xf32>
    %3 = math.tanh %2 : vector<6x8xf32>
    %c0_3 = arith.constant 0 : index
    %c0_4 = arith.constant 0 : index
    %4 = vector.load %arg3[%c0_3, %c0_4] : memref<4x6xf32, #tpu.memory_space<vmem>>, vector<4x6xf32>
    %cst_5 = arith.constant dense<0.000000e+00> : vector<4x8xf32>
    %5 = tpu.matmul %4, %3, %cst_5 {dimension_numbers = #tpu.dot_dimension_numbers<[1], [0], [0], [1], [0, 0, 1, 1], [], []>} : vector<4x6xf32>, vector<6x8xf32>, vector<4x8xf32> -> vector<4x8xf32>
    %c0_6 = arith.constant 0 : index
    %c0_7 = arith.constant 0 : index
    %6 = vector.load %arg4[%c0_6, %c0_7] : memref<4x1xf32, #tpu.memory_space<vmem>>, vector<4x1xf32>
    %7 = vector.broadcast %6 : vector<4x1xf32> to vector<4x8xf32>
    %8 = arith.addf %5, %7 : vector<4x8xf32>
    %c0_8 = arith.constant 0 : index
    %c0_9 = arith.constant 0 : index
    %9 = vector.load %arg5[%c0_8, %c0_9] : memref<4x8xf32, #tpu.memory_space<vmem>>, vector<4x8xf32>
    tpu.vector_store %arg5[%c0_8, %c0_9], %8 {strides = array<i32>} : memref<4x8xf32, #tpu.memory_space<vmem>>, vector<4x8xf32>,
    return
  }
  func.func @transform_0(%arg0: i32) -> (i32, i32) {
    %c0_i32 = arith.constant 0 : i32
    %c0_i32_0 = arith.constant 0 : i32
    return %arg0, %c0_i32 : i32, i32
  }
  func.func @transform_1(%arg0: i32) -> (i32, i32) {
    %c0_i32 = arith.constant 0 : i32
    %c0_i32_0 = arith.constant 0 : i32
    %c0_i32_1 = arith.constant 0 : i32
    return %c0_i32, %c0_i32_0 : i32, i32
  }
  func.func @transform_2(%arg0: i32) -> (i32, i32) {
    %c0_i32 = arith.constant 0 : i32
    %c0_i32_0 = arith.constant 0 : i32
    %c0_i32_1 = arith.constant 0 : i32
    return %c0_i32, %c0_i32_0 : i32, i32
  }
  func.func @transform_3(%arg0: i32) -> (i32, i32) {
    %c0_i32 = arith.constant 0 : i32
    %c0_i32_0 = arith.constant 0 : i32
    %c0_i32_1 = arith.constant 0 : i32
    return %c0_i32, %c0_i32_0 : i32, i32
  }
  func.func @transform_4(%arg0: i32) -> (i32, i32) {
    %c0_i32 = arith.constant 0 : i32
    %c0_i32_0 = arith.constant 0 : i32
    return %c0_i32, %arg0 : i32, i32
  }
}

</mosaic_0001>

<llo_original>
// kernel: tpu_custom_call.1
$region0: #{tpu_custom_call.1}
  #allocation0 [shape = 'u32[]', space=smem, size = 0x4, offset = 0x4, fixed_abs, tag = 'smem constant byte address 0x4 - core index']
  #allocation1 [shape = 'u32[144,128]{1,0:T(1,128)}', space=vmem, size = 0x12000, scoped, tag = 'internal scratch']
  %s0 = inlined_call_operand.hbm [shape: f32[8,16], index: 0, kind: input, shape index: {}]
  %s1 = inlined_call_operand.vmem [shape: f32[6,16], index: 1, kind: input, shape index: {}]
  %s2 = inlined_call_operand.vmem [shape: f32[4,6], index: 2, kind: input, shape index: {}]
  %s3 = inlined_call_operand.vmem [shape: f32[4,1], index: 3, kind: input, shape index: {}]
  %s4 = inlined_call_operand.hbm [shape: f32[4,8], index: 4, kind: output, shape index: {}]
  %s5 = sld [smem:[#allocation0]]
  $region30: #{tpu_custom_call.1} parent=0
    _
  %s7 = ssub.s32 1, %s5
  %s8 = scalar_select 0, %s7, %s5
  $region1: #{tpu_custom_call.1} parent=0
    #allocation2 [shape = 'u8[4096]{0}', space=vmem, size = 0x1000, scoped, tag = 'input window, operand 0, single buffered']
    #allocation3 [shape = 's32[1]{0}', space=sflag, size = 0x4, scoped, tag = 'scoped memory for tpu_custom_call.1']
    #allocation4 [shape = 's32[1]{0}', space=sflag, size = 0x4, scoped, tag = 'scoped memory for tpu_custom_call.1']
    #allocation5 [shape = 'u8[2048]{0}', space=vmem, size = 0x800, scoped, tag = 'output window, operand 0, single buffered']
    %9 = vsyncpa [#allocation3], 0
    %10 = vsyncpa [#allocation4], 0
    // Predicated region
    $region2: #{tpu_custom_call.1} parent=1 // pred_check
      _
    $region3: #{tpu_custom_call.1} parent=1 // pred_check_branch
      %12 = sbr.rel (0) target = $region5
    $region4: #{tpu_custom_call.1} parent=1 // pred_region
      %s14 = ssub.s32 128, 128
      %15 = vsyncadd [#allocation3], %s14
      %s17 = sshll.u32 [#allocation2], 4
      %s18 = int_to_ptr.vmem [resolvable:$true] %s17
      %20 = dma.hbm_to_vmem [thread:$0]  %s0, 128, %s18, [#allocation3]
    $region5: #{tpu_custom_call.1} parent=1 // pred_fallthru
      _
    // Predicated region
    $region6: #{tpu_custom_call.1} parent=1 // pred_check
      _
    $region7: #{tpu_custom_call.1} parent=1 // pred_check_branch
      %22 = sbr.rel (0) target = $region9
    $region8: #{tpu_custom_call.1} parent=1 // pred_region
      _
    $region9: #{tpu_custom_call.1} parent=1 // pred_fallthru
      _
    // Predicated region
    $region10: #{tpu_custom_call.1} parent=1 // pred_check
      _
    $region11: #{tpu_custom_call.1} parent=1 // pred_check_branch
      %24 = sbr.rel (0) target = $region13
    $region12: #{tpu_custom_call.1} parent=1 // pred_region
      _
    $region13: #{tpu_custom_call.1} parent=1 // pred_fallthru
      _
    // Predicated region
    $region14: #{tpu_custom_call.1} parent=1 // pred_check
      _
    $region15: #{tpu_custom_call.1} parent=1 // pred_check_branch
      %26 = sbr.rel (0) target = $region17
    $region16: #{tpu_custom_call.1} parent=1 // pred_region
      _
    $region17: #{tpu_custom_call.1} parent=1 // pred_fallthru
      _
    // Predicated region
    $region18: #{tpu_custom_call.1} parent=1 // pred_check
      _
    $region19: #{tpu_custom_call.1} parent=1 // pred_check_branch
      %28 = sbr.rel (0) target = $region21
    $region20: #{tpu_custom_call.1} parent=1 // pred_region
      %29 = dma.done [#allocation3], 128
    $region21: #{tpu_custom_call.1} parent=1 // pred_fallthru
      _
    %v30 = vld [vmem:[%s1] sm:$0x3f]
    %v31 = vld [vmem:[#allocation2] sm:$0xff]
    %vm32 = vcmask 130048
    %v34 = vsel %vm32, %v30, 0
    %v37 = vsel %vm32, %v31, 0
    %39 = vmatprep.subr.mxu0 0.0
    %40 = vmatpush1.xpose.msra.mxu0 %v37
    %41 = vmatprep.subr.mxu0 0.0
    %42 = vmatpush1.xpose.msra.mxu0 0.0
    %43 = vmatprep.subr.mxu0 0.0
    %44 = vmatpush1.xpose.msra.mxu0 0.0
    %45 = vmatprep.subr.mxu0 0.0
    %46 = vmatpush1.xpose.msra.mxu0 0.0
    %47 = vmatprep.subr.mxu0 0.0
    %48 = vmatpush1.xpose.msra.mxu0 0.0
    %49 = vmatprep.subr.mxu0 0.0
    %50 = vmatpush1.xpose.msra.mxu0 0.0
    %51 = vmatprep.subr.mxu0 0.0
    %52 = vmatpush1.xpose.msra.mxu0 0.0
    %53 = vmatprep.subr.mxu0 0.0
    %54 = vmatpush1.xpose.msra.mxu0 0.0
    %55 = vmatprep.subr.mxu0 0.0
    %56 = vmatpush1.xpose.msra.mxu0 0.0
    %57 = vmatprep.subr.mxu0 0.0
    %58 = vmatpush1.xpose.msra.mxu0 0.0
    %59 = vmatprep.subr.mxu0 0.0
    %60 = vmatpush1.xpose.msra.mxu0 0.0
    %61 = vmatprep.subr.mxu0 0.0
    %62 = vmatpush1.xpose.msra.mxu0 0.0
    %63 = vmatprep.subr.mxu0 0.0
    %64 = vmatpush1.xpose.msra.mxu0 0.0
    %65 = vmatprep.subr.mxu0 0.0
    %66 = vmatpush1.xpose.msra.mxu0 0.0
    %67 = vmatprep.subr.mxu0 0.0
    %68 = vmatpush1.xpose.msra.mxu0 0.0
    %69 = vmatprep.subr.mxu0 0.0
    %70 = vmatpush1.xpose.msra.mxu0 0.0
    %71 = vmatprep.subr.mxu0 0.0
    %72 = vmatpush1.xpose.msra.mxu0 0.0
    %73 = vmatprep.subr.mxu0 0.0
    %74 = vmatpush1.xpose.msra.mxu0 0.0
    %75 = vmatprep.subr.mxu0 0.0
    %76 = vmatpush1.xpose.msra.mxu0 0.0
    %77 = vmatprep.subr.mxu0 0.0
    %78 = vmatpush1.xpose.msra.mxu0 0.0
    %79 = vmatprep.subr.mxu0 0.0
    %80 = vmatpush1.xpose.msra.mxu0 0.0
    %81 = vmatprep.subr.mxu0 0.0
    %82 = vmatpush1.xpose.msra.mxu0 0.0
    %83 = vmatprep.subr.mxu0 0.0
    %84 = vmatpush1.xpose.msra.mxu0 0.0
    %85 = vmatprep.subr.mxu0 0.0
    %86 = vmatpush1.xpose.msra.mxu0 0.0
    %87 = vmatprep.subr.mxu0 0.0
    %88 = vmatpush1.xpose.msra.mxu0 0.0
    %89 = vmatprep.subr.mxu0 0.0
    %90 = vmatpush1.xpose.msra.mxu0 0.0
    %91 = vmatprep.subr.mxu0 0.0
    %92 = vmatpush1.xpose.msra.mxu0 0.0
    %93 = vmatprep.subr.mxu0 0.0
    %94 = vmatpush1.xpose.msra.mxu0 0.0
    %95 = vmatprep.subr.mxu0 0.0
    %96 = vmatpush1.xpose.msra.mxu0 0.0
    %97 = vmatprep.subr.mxu0 0.0
    %98 = vmatpush1.xpose.msra.mxu0 0.0
    %99 = vmatprep.subr.mxu0 0.0
    %100 = vmatpush1.xpose.msra.mxu0 0.0
    %101 = vmatprep.subr.mxu0 0.0
    %102 = vmatpush1.xpose.msra.mxu0 0.0
    %103 = vmatprep.mubr.f32.mxu0 0.0
    %104 = vmatmul.mubr.f32.gmra.mrb[0].mxu0 %v34
    %v105 = vpop.f32.mrb[0].mxu0
    %v106 = vadd.f32 0.0, %v105
    %v107 = vpop.f32.mrb[0].mxu0
    %108 = vdwg.mxu0
    %v109 = vtanh.pop %v106
    %v110 = vld [vmem:[%s2] sm:$0xf]
    %v111 = vld [vmem:[%s3] sm:$0xf]
    %113 = vset.pattern.permute.xlu0 0
    %114 = vperm.xlu0 %113, %v111
    %v115 = vpop.permute.xlu0 %114
    %vm117 = vcmask 48128
    %v119 = vsel %vm117, %v110, 0
    %vm121 = vcmask 1045504
    %v123 = vsel %vm121, %v109, 0
    %125 = vmatprep.subr.mxu0 0.0
    %126 = vmatpush1.msra.mxu0 %v123
    %127 = vmatprep.subr.mxu0 0.0
    %128 = vmatpush1.msra.mxu0 0.0
    %129 = vmatprep.subr.mxu0 0.0
    %130 = vmatpush1.msra.mxu0 0.0
    %131 = vmatprep.subr.mxu0 0.0
    %132 = vmatpush1.msra.mxu0 0.0
    %133 = vmatprep.subr.mxu0 0.0
    %134 = vmatpush1.msra.mxu0 0.0
    %135 = vmatprep.subr.mxu0 0.0
    %136 = vmatpush1.msra.mxu0 0.0
    %137 = vmatprep.subr.mxu0 0.0
    %138 = vmatpush1.msra.mxu0 0.0
    %139 = vmatprep.subr.mxu0 0.0
    %140 = vmatpush1.msra.mxu0 0.0
    %141 = vmatprep.subr.mxu0 0.0
    %142 = vmatpush1.msra.mxu0 0.0
    %143 = vmatprep.subr.mxu0 0.0
    %144 = vmatpush1.msra.mxu0 0.0
    %145 = vmatprep.subr.mxu0 0.0
    %146 = vmatpush1.msra.mxu0 0.0
    %147 = vmatprep.subr.mxu0 0.0
    %148 = vmatpush1.msra.mxu0 0.0
    %149 = vmatprep.subr.mxu0 0.0
    %150 = vmatpush1.msra.mxu0 0.0
    %151 = vmatprep.subr.mxu0 0.0
    %152 = vmatpush1.msra.mxu0 0.0
    %153 = vmatprep.subr.mxu0 0.0
    %154 = vmatpush1.msra.mxu0 0.0
    %155 = vmatprep.subr.mxu0 0.0
    %156 = vmatpush1.msra.mxu0 0.0
    %157 = vmatprep.subr.mxu0 0.0
    %158 = vmatpush1.msra.mxu0 0.0
    %159 = vmatprep.subr.mxu0 0.0
    %160 = vmatpush1.msra.mxu0 0.0
    %161 = vmatprep.subr.mxu0 0.0
    %162 = vmatpush1.msra.mxu0 0.0
    %163 = vmatprep.subr.mxu0 0.0
    %164 = vmatpush1.msra.mxu0 0.0
    %165 = vmatprep.subr.mxu0 0.0
    %166 = vmatpush1.msra.mxu0 0.0
    %167 = vmatprep.subr.mxu0 0.0
    %168 = vmatpush1.msra.mxu0 0.0
    %169 = vmatprep.subr.mxu0 0.0
    %170 = vmatpush1.msra.mxu0 0.0
    %171 = vmatprep.subr.mxu0 0.0
    %172 = vmatpush1.msra.mxu0 0.0
    %173 = vmatprep.subr.mxu0 0.0
    %174 = vmatpush1.msra.mxu0 0.0
    %175 = vmatprep.subr.mxu0 0.0
    %176 = vmatpush1.msra.mxu0 0.0
    %177 = vmatprep.subr.mxu0 0.0
    %178 = vmatpush1.msra.mxu0 0.0
    %179 = vmatprep.subr.mxu0 0.0
    %180 = vmatpush1.msra.mxu0 0.0
    %181 = vmatprep.subr.mxu0 0.0
    %182 = vmatpush1.msra.mxu0 0.0
    %183 = vmatprep.subr.mxu0 0.0
    %184 = vmatpush1.msra.mxu0 0.0
    %185 = vmatprep.subr.mxu0 0.0
    %186 = vmatpush1.msra.mxu0 0.0
    %187 = vmatprep.subr.mxu0 0.0
    %188 = vmatpush1.msra.mxu0 0.0
    %189 = vmatprep.mubr.f32.mxu0 0.0
    %190 = vmatmul.mubr.f32.gmra.mrb[0].mxu0 %v119
    %v191 = vpop.f32.mrb[0].mxu0
    %v192 = vadd.f32 %v115, %v191
    %v193 = vpop.f32.mrb[0].mxu0
    %194 = vdwg.mxu0
    %vm195 = vcmask 60416
    %196 = vst.msk [vmem:[#allocation5] sm:$0xf] %vm195, %v192
    // Predicated region
    $region22: #{tpu_custom_call.1} parent=1 // pred_check
      _
    $region23: #{tpu_custom_call.1} parent=1 // pred_check_branch
      %198 = sbr.rel (0) target = $region25
    $region24: #{tpu_custom_call.1} parent=1 // pred_region
      %s200 = ssub.s32 64, 64
      %201 = vsyncadd [#allocation4], %s200
      %s203 = sshll.u32 [#allocation5], 4
      %s204 = int_to_ptr.vmem [resolvable:$true] %s203
      %206 = dma.vmem_to_hbm [thread:$0]  %s204, 64, %s4, [#allocation4]
    $region25: #{tpu_custom_call.1} parent=1 // pred_fallthru
      _
    // Predicated region
    $region26: #{tpu_custom_call.1} parent=1 // pred_check
      _
    $region27: #{tpu_custom_call.1} parent=1 // pred_check_branch
      %208 = sbr.rel (0) target = $region29
    $region28: #{tpu_custom_call.1} parent=1 // pred_region
      %209 = dma.done [#allocation4], 64
    $region29: #{tpu_custom_call.1} parent=1 // pred_fallthru
      _
    %210 = vsyncpa [#allocation3], 1
    %211 = vsyncpa [#allocation4], 1

</llo_original>
